<compile_context>
chip_gen: v5e
topology: v5e:2x2
jax: 0.10.0
libtpu: 0.0.40
codegen_flags: <defaults>
</compile_context>

<pallas_src>
import jax
import jax.numpy as jnp
from jax.experimental import pallas as pl
from jax.experimental.pallas import tpu as pltpu


def _round_up(x, m):
    return ((x + m - 1) // m) * m


def _make_kernel(TC, Bp, In, Hp, Op, T_real, n_chunks, compute_dtype):
    # Steps i >= tail_start only ever need masking in the (zero-padded) last
    # chunk; all earlier steps are statically known to be valid.
    tail_start = T_real - (n_chunks - 1) * TC

    def kernel(x_ref, wih_ref, whh_ref, b_ref, wfc_ref, bfc_ref, out_ref, h_ref):
        c = pl.program_id(0)

        # h0 = zeros at the first chunk
        @pl.when(c == 0)
        def _():
            h_ref[...] = jnp.zeros_like(h_ref)

        # ---- Phase 1 (per chunk): input projection as ONE large GEMM --------
        # (TC*Bp, In) @ (In, Hp), bias folded in; off the serial h chain.
        xc = x_ref[...].reshape(TC * Bp, In)
        p = jnp.dot(xc, wih_ref[...], preferred_element_type=jnp.float32)
        p = (p + b_ref[...]).reshape(TC, Bp, Hp)

        # ---- Phase 2: sequential recurrence over the chunk -------------------
        h = h_ref[...]                      # (Bp, Hp) f32
        whh = whh_ref[...]                  # (Hp, Hp) pre-transposed
        base_t = c * TC
        for i in range(TC):                 # static unroll (TC is compile-time)
            pre = p[i] + jnp.dot(h.astype(compute_dtype), whh,
                                 preferred_element_type=jnp.float32)
            h_new = jnp.tanh(pre)
            if i >= tail_start:
                # masked update for zero-padded tail timesteps (last chunk only)
                h = jnp.where(base_t + i < T_real, h_new, h)
            else:
                h = h_new
        h_ref[...] = h

        # ---- fused FC head on the final hidden state --------------------------
        @pl.when(c == pl.num_programs(0) - 1)
        def _():
            y = jnp.dot(h.astype(compute_dtype), wfc_ref[...],
                        preferred_element_type=jnp.float32) + bfc_ref[...]
            out_ref[...] = y.astype(out_ref.dtype)

    return kernel


def rnn_regressor_forward(x, params, *, t_chunk=16, compute_dtype=jnp.float32):
    """x: (B, T, input_size) float32. Returns (B, output_size) float32."""
    w_ih, w_hh, b_ih, b_hh, w_fc, b_fc = params
    B, T, In = x.shape
    H = w_ih.shape[0]
    O = w_fc.shape[0]
    assert T >= 1, "empty sequences are not supported"

    Bp = _round_up(B, 8)            # sublane-dense batch
    Hp = _round_up(H, 128)          # lane-dense hidden dim (zero-padding exact)
    Op = _round_up(O, 128)          # lane-dense output slab (unmasked stores)
    TC = min(t_chunk, T)
    n_chunks = (T + TC - 1) // TC
    Tp = n_chunks * TC

    # One-time wrapper-side prep: pre-transposed, zero-padded weights and a
    # single folded RNN bias (b_ih + b_hh). These are loop-invariant and stay
    # resident in VMEM across the whole grid (index_map returns a fixed block).
    w_ih_t = jnp.pad(w_ih.T, ((0, 0), (0, Hp - H))).astype(compute_dtype)        # (In, Hp)
    w_hh_t = jnp.pad(w_hh.T, ((0, Hp - H), (0, Hp - H))).astype(compute_dtype)   # (Hp, Hp)
    bias = jnp.pad((b_ih + b_hh).reshape(1, H),
                   ((0, 0), (0, Hp - H))).astype(jnp.float32)                     # (1, Hp)
    w_fc_t = jnp.pad(w_fc.T, ((0, Hp - H), (0, Op - O))).astype(compute_dtype)    # (Hp, Op)
    b_fc2 = jnp.pad(b_fc.reshape(1, O), ((0, 0), (0, Op - O))).astype(jnp.float32)  # (1, Op)

    # Time-leading, padded input: (Tp, Bp, In). Padded timesteps are masked in
    # the kernel so they never perturb the hidden state.
    xt = jnp.swapaxes(x, 0, 1)
    xt = jnp.pad(xt, ((0, Tp - T), (0, Bp - B), (0, 0))).astype(compute_dtype)

    kernel = _make_kernel(TC, Bp, In, Hp, Op, T, n_chunks, compute_dtype)
    inv = lambda c: (0, 0)   # loop-invariant blocks (weights / biases / output)

    out = pl.pallas_call(
        kernel,
        out_shape=jax.ShapeDtypeStruct((Bp, Op), jnp.float32),
        grid_spec=pltpu.PrefetchScalarGridSpec(
            num_scalar_prefetch=0,
            grid=(n_chunks,),
            in_specs=[
                pl.BlockSpec((TC, Bp, In), lambda c: (c, 0, 0)),  # x chunk
                pl.BlockSpec((In, Hp), inv),                      # W_ih^T
                pl.BlockSpec((Hp, Hp), inv),                      # W_hh^T
                pl.BlockSpec((1, Hp), inv),                       # b_ih + b_hh
                pl.BlockSpec((Hp, Op), inv),                      # W_fc^T
                pl.BlockSpec((1, Op), inv),                       # b_fc
            ],
            out_specs=pl.BlockSpec((Bp, Op), inv),
            scratch_shapes=[pltpu.VMEM((Bp, Hp), jnp.float32)],   # resident h
        ),
        compiler_params=pltpu.CompilerParams(
            dimension_semantics=("arbitrary",)),  # sequential recurrence
    )(xt, w_ih_t, w_hh_t, bias, w_fc_t, b_fc2)

    return out[:B, :O]


def init_params(key, input_size, hidden_size, output_size):
    """Deterministic init mirroring PyTorch's U(-1/sqrt(H), 1/sqrt(H)) scheme."""
    ks = jax.random.split(key, 6)
    bound = 1.0 / jnp.sqrt(jnp.float32(hidden_size))
    u = lambda k, shape: jax.random.uniform(k, shape, jnp.float32, -bound, bound)
    w_ih = u(ks[0], (hidden_size, input_size))
    w_hh = u(ks[1], (hidden_size, hidden_size))
    b_ih = u(ks[2], (hidden_size,))
    b_hh = u(ks[3], (hidden_size,))
    w_fc = u(ks[4], (output_size, hidden_size))
    b_fc = u(ks[5], (output_size,))
    return (w_ih, w_hh, b_ih, b_hh, w_fc, b_fc)


def reference_forward(x, params):
    """Pure-JAX reference matching nn.RNN(tanh) + Linear on the last step."""
    w_ih, w_hh, b_ih, b_hh, w_fc, b_fc = params
    B, T, _ = x.shape
    h = jnp.zeros((B, w_ih.shape[0]), jnp.float32)

    def step(h, x_t):
        h_new = jnp.tanh(x_t @ w_ih.T + b_ih + h @ w_hh.T + b_hh)
        return h_new, None

    h_last, _ = jax.lax.scan(step, h, jnp.swapaxes(x, 0, 1))
    return h_last @ w_fc.T + b_fc


if __name__ == "__main__":
    # Primary check: module-default-ish sizes (single chunk, T divides exactly).
    B, T, In, H, O = 2, 8, 4, 32, 1
    key = jax.random.PRNGKey(0)
    kx, kp = jax.random.split(key)
    x = jax.random.normal(kx, (B, T, In), jnp.float32)
    params = init_params(kp, In, H, O)

    out = jax.block_until_ready(rnn_regressor_forward(x, params))
    ref = reference_forward(x, params)
    assert out.shape == (B, O), out.shape
    assert jnp.allclose(out, ref, atol=1e-4, rtol=1e-4), (out, ref)

    # Secondary check: multi-chunk grid, ragged T (tail masking), batch padding,
    # output_size > 1.
    B2, T2, In2, H2, O2 = 3, 20, 5, 32, 2
    kx2, kp2 = jax.random.split(jax.random.PRNGKey(1))
    x2 = jax.random.normal(kx2, (B2, T2, In2), jnp.float32)
    params2 = init_params(kp2, In2, H2, O2)

    out2 = jax.block_until_ready(rnn_regressor_forward(x2, params2, t_chunk=8))
    ref2 = reference_forward(x2, params2)
    assert out2.shape == (B2, O2), out2.shape
    assert jnp.allclose(out2, ref2, atol=1e-4, rtol=1e-4), (out2, ref2)

    print("KERNEL_OK")
</pallas_src>

<mosaic_0001>
module attributes {stable_mosaic.version = 11 : i64} {
  func.func @kernel(%arg0: i32, %arg1: memref<8x8x4xf32, #tpu.memory_space<vmem>>, %arg2: memref<4x128xf32, #tpu.memory_space<vmem>>, %arg3: memref<128x128xf32, #tpu.memory_space<vmem>>, %arg4: memref<1x128xf32, #tpu.memory_space<vmem>>, %arg5: memref<128x128xf32, #tpu.memory_space<vmem>>, %arg6: memref<1x128xf32, #tpu.memory_space<vmem>>, %arg7: memref<8x128xf32, #tpu.memory_space<vmem>>, %arg8: memref<8x128xf32, #tpu.memory_space<vmem>>) attributes {dimension_semantics = [#tpu.dimension_semantics<arbitrary>], iteration_bounds = array<i64: 1>, scalar_prefetch = 0 : i64, scratch_operands = 1 : i64, tpu.core_type = #tpu.core_type<tc>, window_params = [{transform_indices = @transform_0, window_bounds = array<i64: 8, 8, 4>}, {pipeline_mode = #tpu.pipeline_mode<synchronous>, transform_indices = @transform_1, window_bounds = array<i64: 4, 128>}, {pipeline_mode = #tpu.pipeline_mode<synchronous>, transform_indices = @transform_2, window_bounds = array<i64: 128, 128>}, {pipeline_mode = #tpu.pipeline_mode<synchronous>, transform_indices = @transform_3, window_bounds = array<i64: 1, 128>}, {pipeline_mode = #tpu.pipeline_mode<synchronous>, transform_indices = @transform_4, window_bounds = array<i64: 128, 128>}, {pipeline_mode = #tpu.pipeline_mode<synchronous>, transform_indices = @transform_5, window_bounds = array<i64: 1, 128>}, {pipeline_mode = #tpu.pipeline_mode<synchronous>, transform_indices = @transform_6, window_bounds = array<i64: 8, 128>}]} {
    %c0_i32 = arith.constant 0 : i32
    %0 = arith.cmpi eq, %arg0, %c0_i32 : i32
    %1 = arith.extui %0 : i1 to i32
    %c0_i32_0 = arith.constant 0 : i32
    %2 = arith.cmpi ne, %1, %c0_i32_0 : i32
    scf.if %2 {
      %cst_23 = arith.constant 0.000000e+00 : f32
      %57 = vector.broadcast %cst_23 : f32 to vector<8x128xf32>
      %c0_24 = arith.constant 0 : index
      %c0_25 = arith.constant 0 : index
      %58 = vector.load %arg8[%c0_24, %c0_25] : memref<8x128xf32, #tpu.memory_space<vmem>>, vector<8x128xf32>
      tpu.vector_store %arg8[%c0_24, %c0_25], %57 {strides = array<i32>} : memref<8x128xf32, #tpu.memory_space<vmem>>, vector<8x128xf32>,
    } else {
    }
    %c0 = arith.constant 0 : index
    %c0_1 = arith.constant 0 : index
    %c0_2 = arith.constant 0 : index
    %3 = vector.load %arg1[%c0, %c0_1, %c0_2] : memref<8x8x4xf32, #tpu.memory_space<vmem>>, vector<8x8x4xf32>
    %4 = vector.shape_cast %3 : vector<8x8x4xf32> to vector<64x4xf32>
    %c0_3 = arith.constant 0 : index
    %c0_4 = arith.constant 0 : index
    %5 = vector.load %arg2[%c0_3, %c0_4] : memref<4x128xf32, #tpu.memory_space<vmem>>, vector<4x128xf32>
    %cst = arith.constant dense<0.000000e+00> : vector<64x128xf32>
    %6 = tpu.matmul %4, %5, %cst {dimension_numbers = #tpu.dot_dimension_numbers<[1], [0], [0], [1], [0, 0, 1, 1], [], []>} : vector<64x4xf32>, vector<4x128xf32>, vector<64x128xf32> -> vector<64x128xf32>
    %c0_5 = arith.constant 0 : index
    %c0_6 = arith.constant 0 : index
    %7 = vector.load %arg4[%c0_5, %c0_6] : memref<1x128xf32, #tpu.memory_space<vmem>>, vector<1x128xf32>
    %8 = vector.broadcast %7 : vector<1x128xf32> to vector<64x128xf32>
    %9 = arith.addf %6, %8 : vector<64x128xf32>
    %10 = vector.shape_cast %9 : vector<64x128xf32> to vector<8x8x128xf32>
    %c0_7 = arith.constant 0 : index
    %c0_8 = arith.constant 0 : index
    %11 = vector.load %arg8[%c0_7, %c0_8] : memref<8x128xf32, #tpu.memory_space<vmem>>, vector<8x128xf32>
    %c0_9 = arith.constant 0 : index
    %c0_10 = arith.constant 0 : index
    %12 = vector.load %arg3[%c0_9, %c0_10] : memref<128x128xf32, #tpu.memory_space<vmem>>, vector<128x128xf32>
    %13 = vector.extract_strided_slice %10 {offsets = [0, 0, 0], sizes = [1, 8, 128], strides = [1, 1, 1]} : vector<8x8x128xf32> to vector<1x8x128xf32>
    %14 = vector.shape_cast %13 : vector<1x8x128xf32> to vector<8x128xf32>
    %cst_11 = arith.constant dense<0.000000e+00> : vector<8x128xf32>
    %15 = tpu.matmul %11, %12, %cst_11 {dimension_numbers = #tpu.dot_dimension_numbers<[1], [0], [0], [1], [0, 0, 1, 1], [], []>} : vector<8x128xf32>, vector<128x128xf32>, vector<8x128xf32> -> vector<8x128xf32>
    %16 = arith.addf %14, %15 : vector<8x128xf32>
    %17 = math.tanh %16 : vector<8x128xf32>
    %18 = vector.extract_strided_slice %10 {offsets = [1, 0, 0], sizes = [1, 8, 128], strides = [1, 1, 1]} : vector<8x8x128xf32> to vector<1x8x128xf32>
    %19 = vector.shape_cast %18 : vector<1x8x128xf32> to vector<8x128xf32>
    %cst_12 = arith.constant dense<0.000000e+00> : vector<8x128xf32>
    %20 = tpu.matmul %17, %12, %cst_12 {dimension_numbers = #tpu.dot_dimension_numbers<[1], [0], [0], [1], [0, 0, 1, 1], [], []>} : vector<8x128xf32>, vector<128x128xf32>, vector<8x128xf32> -> vector<8x128xf32>
    %21 = arith.addf %19, %20 : vector<8x128xf32>
    %22 = math.tanh %21 : vector<8x128xf32>
    %23 = vector.extract_strided_slice %10 {offsets = [2, 0, 0], sizes = [1, 8, 128], strides = [1, 1, 1]} : vector<8x8x128xf32> to vector<1x8x128xf32>
    %24 = vector.shape_cast %23 : vector<1x8x128xf32> to vector<8x128xf32>
    %cst_13 = arith.constant dense<0.000000e+00> : vector<8x128xf32>
    %25 = tpu.matmul %22, %12, %cst_13 {dimension_numbers = #tpu.dot_dimension_numbers<[1], [0], [0], [1], [0, 0, 1, 1], [], []>} : vector<8x128xf32>, vector<128x128xf32>, vector<8x128xf32> -> vector<8x128xf32>
    %26 = arith.addf %24, %25 : vector<8x128xf32>
    %27 = math.tanh %26 : vector<8x128xf32>
    %28 = vector.extract_strided_slice %10 {offsets = [3, 0, 0], sizes = [1, 8, 128], strides = [1, 1, 1]} : vector<8x8x128xf32> to vector<1x8x128xf32>
    %29 = vector.shape_cast %28 : vector<1x8x128xf32> to vector<8x128xf32>
    %cst_14 = arith.constant dense<0.000000e+00> : vector<8x128xf32>
    %30 = tpu.matmul %27, %12, %cst_14 {dimension_numbers = #tpu.dot_dimension_numbers<[1], [0], [0], [1], [0, 0, 1, 1], [], []>} : vector<8x128xf32>, vector<128x128xf32>, vector<8x128xf32> -> vector<8x128xf32>
    %31 = arith.addf %29, %30 : vector<8x128xf32>
    %32 = math.tanh %31 : vector<8x128xf32>
    %33 = vector.extract_strided_slice %10 {offsets = [4, 0, 0], sizes = [1, 8, 128], strides = [1, 1, 1]} : vector<8x8x128xf32> to vector<1x8x128xf32>
    %34 = vector.shape_cast %33 : vector<1x8x128xf32> to vector<8x128xf32>
    %cst_15 = arith.constant dense<0.000000e+00> : vector<8x128xf32>
    %35 = tpu.matmul %32, %12, %cst_15 {dimension_numbers = #tpu.dot_dimension_numbers<[1], [0], [0], [1], [0, 0, 1, 1], [], []>} : vector<8x128xf32>, vector<128x128xf32>, vector<8x128xf32> -> vector<8x128xf32>
    %36 = arith.addf %34, %35 : vector<8x128xf32>
    %37 = math.tanh %36 : vector<8x128xf32>
    %38 = vector.extract_strided_slice %10 {offsets = [5, 0, 0], sizes = [1, 8, 128], strides = [1, 1, 1]} : vector<8x8x128xf32> to vector<1x8x128xf32>
    %39 = vector.shape_cast %38 : vector<1x8x128xf32> to vector<8x128xf32>
    %cst_16 = arith.constant dense<0.000000e+00> : vector<8x128xf32>
    %40 = tpu.matmul %37, %12, %cst_16 {dimension_numbers = #tpu.dot_dimension_numbers<[1], [0], [0], [1], [0, 0, 1, 1], [], []>} : vector<8x128xf32>, vector<128x128xf32>, vector<8x128xf32> -> vector<8x128xf32>
    %41 = arith.addf %39, %40 : vector<8x128xf32>
    %42 = math.tanh %41 : vector<8x128xf32>
    %43 = vector.extract_strided_slice %10 {offsets = [6, 0, 0], sizes = [1, 8, 128], strides = [1, 1, 1]} : vector<8x8x128xf32> to vector<1x8x128xf32>
    %44 = vector.shape_cast %43 : vector<1x8x128xf32> to vector<8x128xf32>
    %cst_17 = arith.constant dense<0.000000e+00> : vector<8x128xf32>
    %45 = tpu.matmul %42, %12, %cst_17 {dimension_numbers = #tpu.dot_dimension_numbers<[1], [0], [0], [1], [0, 0, 1, 1], [], []>} : vector<8x128xf32>, vector<128x128xf32>, vector<8x128xf32> -> vector<8x128xf32>
    %46 = arith.addf %44, %45 : vector<8x128xf32>
    %47 = math.tanh %46 : vector<8x128xf32>
    %48 = vector.extract_strided_slice %10 {offsets = [7, 0, 0], sizes = [1, 8, 128], strides = [1, 1, 1]} : vector<8x8x128xf32> to vector<1x8x128xf32>
    %49 = vector.shape_cast %48 : vector<1x8x128xf32> to vector<8x128xf32>
    %cst_18 = arith.constant dense<0.000000e+00> : vector<8x128xf32>
    %50 = tpu.matmul %47, %12, %cst_18 {dimension_numbers = #tpu.dot_dimension_numbers<[1], [0], [0], [1], [0, 0, 1, 1], [], []>} : vector<8x128xf32>, vector<128x128xf32>, vector<8x128xf32> -> vector<8x128xf32>
    %51 = arith.addf %49, %50 : vector<8x128xf32>
    %52 = math.tanh %51 : vector<8x128xf32>
    %c0_19 = arith.constant 0 : index
    %c0_20 = arith.constant 0 : index
    %53 = vector.load %arg8[%c0_19, %c0_20] : memref<8x128xf32, #tpu.memory_space<vmem>>, vector<8x128xf32>
    tpu.vector_store %arg8[%c0_19, %c0_20], %52 {strides = array<i32>} : memref<8x128xf32, #tpu.memory_space<vmem>>, vector<8x128xf32>,
    %c0_i32_21 = arith.constant 0 : i32
    %54 = arith.cmpi eq, %arg0, %c0_i32_21 : i32
    %55 = arith.extui %54 : i1 to i32
    %c0_i32_22 = arith.constant 0 : i32
    %56 = arith.cmpi ne, %55, %c0_i32_22 : i32
    scf.if %56 {
      %c0_23 = arith.constant 0 : index
      %c0_24 = arith.constant 0 : index
      %57 = vector.load %arg5[%c0_23, %c0_24] : memref<128x128xf32, #tpu.memory_space<vmem>>, vector<128x128xf32>
      %cst_25 = arith.constant dense<0.000000e+00> : vector<8x128xf32>
      %58 = tpu.matmul %52, %57, %cst_25 {dimension_numbers = #tpu.dot_dimension_numbers<[1], [0], [0], [1], [0, 0, 1, 1], [], []>} : vector<8x128xf32>, vector<128x128xf32>, vector<8x128xf32> -> vector<8x128xf32>
      %c0_26 = arith.constant 0 : index
      %c0_27 = arith.constant 0 : index
      %59 = vector.load %arg6[%c0_26, %c0_27] : memref<1x128xf32, #tpu.memory_space<vmem>>, vector<1x128xf32>
      %60 = vector.broadcast %59 : vector<1x128xf32> to vector<8x128xf32>
      %61 = arith.addf %58, %60 : vector<8x128xf32>
      %c0_28 = arith.constant 0 : index
      %c0_29 = arith.constant 0 : index
      %62 = vector.load %arg7[%c0_28, %c0_29] : memref<8x128xf32, #tpu.memory_space<vmem>>, vector<8x128xf32>
      tpu.vector_store %arg7[%c0_28, %c0_29], %61 {strides = array<i32>} : memref<8x128xf32, #tpu.memory_space<vmem>>, vector<8x128xf32>,
    } else {
    }
    return
  }
  func.func @transform_0(%arg0: i32) -> (i32, i32, i32) {
    %c0_i32 = arith.constant 0 : i32
    %c0_i32_0 = arith.constant 0 : i32
    %c0_i32_1 = arith.constant 0 : i32
    return %arg0, %c0_i32, %c0_i32_0 : i32, i32, i32
  }
  func.func @transform_1(%arg0: i32) -> (i32, i32) {
    %c0_i32 = arith.constant 0 : i32
    %c0_i32_0 = arith.constant 0 : i32
    %c0_i32_1 = arith.constant 0 : i32
    return %c0_i32, %c0_i32_0 : i32, i32
  }
  func.func @transform_2(%arg0: i32) -> (i32, i32) {
    %c0_i32 = arith.constant 0 : i32
    %c0_i32_0 = arith.constant 0 : i32
    %c0_i32_1 = arith.constant 0 : i32
    return %c0_i32, %c0_i32_0 : i32, i32
  }
  func.func @transform_3(%arg0: i32) -> (i32, i32) {
    %c0_i32 = arith.constant 0 : i32
    %c0_i32_0 = arith.constant 0 : i32
    %c0_i32_1 = arith.constant 0 : i32
    return %c0_i32, %c0_i32_0 : i32, i32
  }
  func.func @transform_4(%arg0: i32) -> (i32, i32) {
    %c0_i32 = arith.constant 0 : i32
    %c0_i32_0 = arith.constant 0 : i32
    %c0_i32_1 = arith.constant 0 : i32
    return %c0_i32, %c0_i32_0 : i32, i32
  }
  func.func @transform_5(%arg0: i32) -> (i32, i32) {
    %c0_i32 = arith.constant 0 : i32
    %c0_i32_0 = arith.constant 0 : i32
    %c0_i32_1 = arith.constant 0 : i32
    return %c0_i32, %c0_i32_0 : i32, i32
  }
  func.func @transform_6(%arg0: i32) -> (i32, i32) {
    %c0_i32 = arith.constant 0 : i32
    %c0_i32_0 = arith.constant 0 : i32
    %c0_i32_1 = arith.constant 0 : i32
    return %c0_i32, %c0_i32_0 : i32, i32
  }
}

</mosaic_0001>

<llo_original>
// kernel: tpu_custom_call.1
$region0: #{tpu_custom_call.1}
  #allocation0 [shape = 'u32[]', space=smem, size = 0x4, offset = 0x4, fixed_abs, tag = 'smem constant byte address 0x4 - core index']
  #allocation1 [shape = 'u32[72,128]{1,0:T(1,128)}', space=vmem, size = 0x9000, scoped, tag = 'internal scratch']
  #allocation2 [shape = 'f32[8,128]{1,0:T(8,128)}', space=vmem, size = 0x1000, scoped, tag = 'scratch operand']
  %s0 = inlined_call_operand.vmem [shape: f32[8,8,4], index: 0, kind: input, shape index: {}]
  %s1 = inlined_call_operand.vmem [shape: f32[4,128], index: 1, kind: input, shape index: {}]
  %s2 = inlined_call_operand.hbm [shape: f32[128,128], index: 2, kind: input, shape index: {}]
  %s3 = inlined_call_operand.vmem [shape: f32[1,128], index: 3, kind: input, shape index: {}]
  %s4 = inlined_call_operand.hbm [shape: f32[128,128], index: 4, kind: input, shape index: {}]
  %s5 = inlined_call_operand.vmem [shape: f32[1,128], index: 5, kind: input, shape index: {}]
  %s6 = inlined_call_operand.hbm [shape: f32[8,128], index: 6, kind: output, shape index: {}]
  %s7 = sld [smem:[#allocation0]]
  $region50: #{tpu_custom_call.1} parent=0
    _
  %s9 = ssub.s32 1, %s7
  %s10 = scalar_select 0, %s9, %s7
  $region1: #{tpu_custom_call.1} parent=0
    #allocation3 [shape = 'u8[65536]{0}', space=vmem, size = 0x10000, scoped, tag = 'input window, operand 2, single buffered']
    #allocation4 [shape = 's32[1]{0}', space=sflag, size = 0x4, scoped, tag = 'scoped memory for tpu_custom_call.1']
    #allocation5 [shape = 's32[1]{0}', space=sflag, size = 0x4, scoped, tag = 'scoped memory for tpu_custom_call.1']
    #allocation6 [shape = 'u8[65536]{0}', space=vmem, size = 0x10000, scoped, tag = 'input window, operand 4, single buffered']
    #allocation7 [shape = 's32[1]{0}', space=sflag, size = 0x4, scoped, tag = 'scoped memory for tpu_custom_call.1']
    #allocation8 [shape = 'u8[4096]{0}', space=vmem, size = 0x1000, scoped, tag = 'output window, operand 0, single buffered']
    %11 = vsyncpa [#allocation4], 0
    %12 = vsyncpa [#allocation7], 0
    %13 = vsyncpa [#allocation5], 0
    // Predicated region
    $region2: #{tpu_custom_call.1} parent=1 // pred_check
      _
    $region3: #{tpu_custom_call.1} parent=1 // pred_check_branch
      %15 = sbr.rel (0) target = $region5
    $region4: #{tpu_custom_call.1} parent=1 // pred_region
      _
    $region5: #{tpu_custom_call.1} parent=1 // pred_fallthru
      _
    // Predicated region
    $region6: #{tpu_custom_call.1} parent=1 // pred_check
      _
    $region7: #{tpu_custom_call.1} parent=1 // pred_check_branch
      %17 = sbr.rel (0) target = $region9
    $region8: #{tpu_custom_call.1} parent=1 // pred_region
      _
    $region9: #{tpu_custom_call.1} parent=1 // pred_fallthru
      _
    // Predicated region
    $region10: #{tpu_custom_call.1} parent=1 // pred_check
      _
    $region11: #{tpu_custom_call.1} parent=1 // pred_check_branch
      %19 = sbr.rel (0) target = $region13
    $region12: #{tpu_custom_call.1} parent=1 // pred_region
      %21 = vsyncadd [#allocation4], 0
      %s22 = sshll.u32 %s2, 4
      %s23 = int_to_ptr.hbm [resolvable:$true] %s22
      %s24 = sshll.u32 [#allocation3], 4
      %s25 = int_to_ptr.vmem [resolvable:$true] %s24
      %30 = dma.hbm_to_vmem [thread:$0]  %s23, 2048, %s25, [#allocation4], 128, 128, 8
    $region13: #{tpu_custom_call.1} parent=1 // pred_fallthru
      _
    // Predicated region
    $region14: #{tpu_custom_call.1} parent=1 // pred_check
      _
    $region15: #{tpu_custom_call.1} parent=1 // pred_check_branch
      %32 = sbr.rel (0) target = $region17
    $region16: #{tpu_custom_call.1} parent=1 // pred_region
      _
    $region17: #{tpu_custom_call.1} parent=1 // pred_fallthru
      _
    // Predicated region
    $region18: #{tpu_custom_call.1} parent=1 // pred_check
      _
    $region19: #{tpu_custom_call.1} parent=1 // pred_check_branch
      %34 = sbr.rel (0) target = $region21
    $region20: #{tpu_custom_call.1} parent=1 // pred_region
      %36 = vsyncadd [#allocation7], 0
      %s37 = sshll.u32 %s4, 4
      %s38 = int_to_ptr.hbm [resolvable:$true] %s37
      %s39 = sshll.u32 [#allocation6], 4
      %s40 = int_to_ptr.vmem [resolvable:$true] %s39
      %45 = dma.hbm_to_vmem [thread:$0]  %s38, 2048, %s40, [#allocation7], 128, 128, 8
    $region21: #{tpu_custom_call.1} parent=1 // pred_fallthru
      _
    // Predicated region
    $region22: #{tpu_custom_call.1} parent=1 // pred_check
      _
    $region23: #{tpu_custom_call.1} parent=1 // pred_check_branch
      %47 = sbr.rel (0) target = $region25
    $region24: #{tpu_custom_call.1} parent=1 // pred_region
      _
    $region25: #{tpu_custom_call.1} parent=1 // pred_fallthru
      _
    // Predicated region
    $region26: #{tpu_custom_call.1} parent=1 // pred_check
      _
    $region27: #{tpu_custom_call.1} parent=1 // pred_check_branch
      %49 = sbr.rel (0) target = $region29
    $region28: #{tpu_custom_call.1} parent=1 // pred_region
      %51 = dma.done [#allocation4], 2048
    $region29: #{tpu_custom_call.1} parent=1 // pred_fallthru
      _
    // Predicated region
    $region30: #{tpu_custom_call.1} parent=1 // pred_check
      _
    $region31: #{tpu_custom_call.1} parent=1 // pred_check_branch
      %53 = sbr.rel (0) target = $region33
    $region32: #{tpu_custom_call.1} parent=1 // pred_region
      %55 = dma.done [#allocation7], 2048
    $region33: #{tpu_custom_call.1} parent=1 // pred_fallthru
      _
    %p56 = scmp.eq.s32.totalorder 0, 0
    // Predicated region
    $region34: #{tpu_custom_call.1} parent=1 // pred_check
      %p57 = pneg %p56
    $region35: #{tpu_custom_call.1} parent=1 // pred_check_branch
      %59 = sbr.rel (%p57) target = $region37
    $region36: #{tpu_custom_call.1} parent=1 // pred_region
      %60 = vst [vmem:[#allocation2] sm:$0xff] 0.0
    $region37: #{tpu_custom_call.1} parent=1 // pred_fallthru
      _
    %v61 = vld [vmem:[%s0] sm:$0xff]
    %v62 = vld [vmem:[%s0 + $0x8] sm:$0xff]
    %v63 = vld [vmem:[%s0 + $0x10] sm:$0xff]
    %v64 = vld [vmem:[%s0 + $0x18] sm:$0xff]
    %v65 = vld [vmem:[%s0 + $0x20] sm:$0xff]
    %v66 = vld [vmem:[%s0 + $0x28] sm:$0xff]
    %v67 = vld [vmem:[%s0 + $0x30] sm:$0xff]
    %v68 = vld [vmem:[%s0 + $0x38] sm:$0xff]
    %v69 = vld [vmem:[%s1] sm:$0xf]
    %v70 = vld [vmem:[%s3] sm:$0x1]
    %v72 = vperm.slane %v70, 0
    %vm74 = vcmask 31744
    %v76 = vsel %vm74, %v61, 0
    %v79 = vsel %vm74, %v62, 0
    %v82 = vsel %vm74, %v63, 0
    %v85 = vsel %vm74, %v64, 0
    %v88 = vsel %vm74, %v65, 0
    %v91 = vsel %vm74, %v66, 0
    %v94 = vsel %vm74, %v67, 0
    %v97 = vsel %vm74, %v68, 0
    %vm99 = vcmask 1043456
    %v101 = vsel %vm99, %v69, 0
    %103 = vmatpush.msra.mxu0 0.0
    %104 = vmatpush.msra.mxu0 0.0
    %105 = vmatpush.msra.mxu0 0.0
    %106 = vmatpush.msra.mxu0 0.0
    %107 = vmatpush.msra.mxu0 0.0
    %108 = vmatpush.msra.mxu0 0.0
    %109 = vmatpush.msra.mxu0 0.0
    %110 = vmatpush.msra.mxu0 0.0
    %111 = vmatpush.msra.mxu0 0.0
    %112 = vmatpush.msra.mxu0 0.0
    %113 = vmatpush.msra.mxu0 0.0
    %114 = vmatpush.msra.mxu0 0.0
    %115 = vmatpush.msra.mxu0 0.0
    %116 = vmatpush.msra.mxu0 0.0
    %117 = vmatpush.msra.mxu0 0.0
    %118 = vmatpush.msra.mxu0 %v101
    %119 = vmatmul.f32.gmra.mxu0 %v76
    %v120 = vpop.f32.mrf.mxu0
    %v121 = vadd.f32 %v72, %v120
    %122 = vmatmul.f32.gmra.mxu0 %v79
    %v123 = vpop.f32.mrf.mxu0
    %v124 = vadd.f32 %v72, %v123
    %125 = vmatmul.f32.gmra.mxu0 %v82
    %v126 = vpop.f32.mrf.mxu0
    %v127 = vadd.f32 %v72, %v126
    %128 = vmatmul.f32.gmra.mxu0 %v85
    %v129 = vpop.f32.mrf.mxu0
    %v130 = vadd.f32 %v72, %v129
    %131 = vmatmul.f32.gmra.mxu0 %v88
    %v132 = vpop.f32.mrf.mxu0
    %v133 = vadd.f32 %v72, %v132
    %134 = vmatmul.f32.gmra.mxu0 %v91
    %v135 = vpop.f32.mrf.mxu0
    %v136 = vadd.f32 %v72, %v135
    %137 = vmatmul.f32.gmra.mxu0 %v94
    %v138 = vpop.f32.mrf.mxu0
    %v139 = vadd.f32 %v72, %v138
    %140 = vmatmul.f32.gmra.mxu0 %v97
    %v141 = vpop.f32.mrf.mxu0
    %v142 = vadd.f32 %v72, %v141
    %143 = vdwg.mxu0
    %v144 = vld [vmem:[#allocation2] sm:$0xff]
    %v145 = vld [vmem:[#allocation3] sm:$0xff]
    %v146 = vld [vmem:[#allocation3 + $0x8] sm:$0xff]
    %v147 = vld [vmem:[#allocation3 + $0x10] sm:$0xff]
    %v148 = vld [vmem:[#allocation3 + $0x18] sm:$0xff]
    %v149 = vld [vmem:[#allocation3 + $0x20] sm:$0xff]
    %v150 = vld [vmem:[#allocation3 + $0x28] sm:$0xff]
    %v151 = vld [vmem:[#allocation3 + $0x30] sm:$0xff]
    %v152 = vld [vmem:[#allocation3 + $0x38] sm:$0xff]
    %v153 = vld [vmem:[#allocation3 + $0x40] sm:$0xff]
    %v154 = vld [vmem:[#allocation3 + $0x48] sm:$0xff]
    %v155 = vld [vmem:[#allocation3 + $0x50] sm:$0xff]
    %v156 = vld [vmem:[#allocation3 + $0x58] sm:$0xff]
    %v157 = vld [vmem:[#allocation3 + $0x60] sm:$0xff]
    %v158 = vld [vmem:[#allocation3 + $0x68] sm:$0xff]
    %v159 = vld [vmem:[#allocation3 + $0x70] sm:$0xff]
    %v160 = vld [vmem:[#allocation3 + $0x78] sm:$0xff]
    %161 = vmatpush.msra.mxu0 %v160
    %162 = vmatpush.msra.mxu0 %v159
    %163 = vmatpush.msra.mxu0 %v158
    %164 = vmatpush.msra.mxu0 %v157
    %165 = vmatpush.msra.mxu0 %v156
    %166 = vmatpush.msra.mxu0 %v155
    %167 = vmatpush.msra.mxu0 %v154
    %168 = vmatpush.msra.mxu0 %v153
    %169 = vmatpush.msra.mxu0 %v152
    %170 = vmatpush.msra.mxu0 %v151
    %171 = vmatpush.msra.mxu0 %v150
    %172 = vmatpush.msra.mxu0 %v149
    %173 = vmatpush.msra.mxu0 %v148
    %174 = vmatpush.msra.mxu0 %v147
    %175 = vmatpush.msra.mxu0 %v146
    %176 = vmatpush.msra.mxu0 %v145
    %177 = vmatmul.f32.gmra.mxu0 %v144
    %v178 = vpop.f32.mrf.mxu0
    %v179 = vadd.f32 0.0, %v178
    %180 = vdwg.mxu0
    %v181 = vadd.f32 %v121, %v179
    %v182 = vtanh.pop %v181
    %183 = vmatpush.msra.mxu0 %v160
    %184 = vmatpush.msra.mxu0 %v159
    %185 = vmatpush.msra.mxu0 %v158
    %186 = vmatpush.msra.mxu0 %v157
    %187 = vmatpush.msra.mxu0 %v156
    %188 = vmatpush.msra.mxu0 %v155
    %189 = vmatpush.msra.mxu0 %v154
    %190 = vmatpush.msra.mxu0 %v153
    %191 = vmatpush.msra.mxu0 %v152
    %192 = vmatpush.msra.mxu0 %v151
    %193 = vmatpush.msra.mxu0 %v150
    %194 = vmatpush.msra.mxu0 %v149
    %195 = vmatpush.msra.mxu0 %v148
    %196 = vmatpush.msra.mxu0 %v147
    %197 = vmatpush.msra.mxu0 %v146
    %198 = vmatpush.msra.mxu0 %v145
    %199 = vmatmul.f32.gmra.mxu0 %v182
    %v200 = vpop.f32.mrf.mxu0
    %v201 = vadd.f32 0.0, %v200
    %202 = vdwg.mxu0
    %v203 = vadd.f32 %v124, %v201
    %v204 = vtanh.pop %v203
    %205 = vmatpush.msra.mxu0 %v160
    %206 = vmatpush.msra.mxu0 %v159
    %207 = vmatpush.msra.mxu0 %v158
    %208 = vmatpush.msra.mxu0 %v157
    %209 = vmatpush.msra.mxu0 %v156
    %210 = vmatpush.msra.mxu0 %v155
    %211 = vmatpush.msra.mxu0 %v154
    %212 = vmatpush.msra.mxu0 %v153
    %213 = vmatpush.msra.mxu0 %v152
    %214 = vmatpush.msra.mxu0 %v151
    %215 = vmatpush.msra.mxu0 %v150
    %216 = vmatpush.msra.mxu0 %v149
    %217 = vmatpush.msra.mxu0 %v148
    %218 = vmatpush.msra.mxu0 %v147
    %219 = vmatpush.msra.mxu0 %v146
    %220 = vmatpush.msra.mxu0 %v145
    %221 = vmatmul.f32.gmra.mxu0 %v204
    %v222 = vpop.f32.mrf.mxu0
    %v223 = vadd.f32 0.0, %v222
    %224 = vdwg.mxu0
    %v225 = vadd.f32 %v127, %v223
    %v226 = vtanh.pop %v225
    %227 = vmatpush.msra.mxu0 %v160
    %228 = vmatpush.msra.mxu0 %v159
    %229 = vmatpush.msra.mxu0 %v158
    %230 = vmatpush.msra.mxu0 %v157
    %231 = vmatpush.msra.mxu0 %v156
    %232 = vmatpush.msra.mxu0 %v155
    %233 = vmatpush.msra.mxu0 %v154
    %234 = vmatpush.msra.mxu0 %v153
    %235 = vmatpush.msra.mxu0 %v152
    %236 = vmatpush.msra.mxu0 %v151
    %237 = vmatpush.msra.mxu0 %v150
    %238 = vmatpush.msra.mxu0 %v149
    %239 = vmatpush.msra.mxu0 %v148
    %240 = vmatpush.msra.mxu0 %v147
    %241 = vmatpush.msra.mxu0 %v146
    %242 = vmatpush.msra.mxu0 %v145
    %243 = vmatmul.f32.gmra.mxu0 %v226
    %v244 = vpop.f32.mrf.mxu0
    %v245 = vadd.f32 0.0, %v244
    %246 = vdwg.mxu0
    %v247 = vadd.f32 %v130, %v245
    %v248 = vtanh.pop %v247
    %249 = vmatpush.msra.mxu0 %v160
    %250 = vmatpush.msra.mxu0 %v159
    %251 = vmatpush.msra.mxu0 %v158
    %252 = vmatpush.msra.mxu0 %v157
    %253 = vmatpush.msra.mxu0 %v156
    %254 = vmatpush.msra.mxu0 %v155
    %255 = vmatpush.msra.mxu0 %v154
    %256 = vmatpush.msra.mxu0 %v153
    %257 = vmatpush.msra.mxu0 %v152
    %258 = vmatpush.msra.mxu0 %v151
    %259 = vmatpush.msra.mxu0 %v150
    %260 = vmatpush.msra.mxu0 %v149
    %261 = vmatpush.msra.mxu0 %v148
    %262 = vmatpush.msra.mxu0 %v147
    %263 = vmatpush.msra.mxu0 %v146
    %264 = vmatpush.msra.mxu0 %v145
    %265 = vmatmul.f32.gmra.mxu0 %v248
    %v266 = vpop.f32.mrf.mxu0
    %v267 = vadd.f32 0.0, %v266
    %268 = vdwg.mxu0
    %v269 = vadd.f32 %v133, %v267
    %v270 = vtanh.pop %v269
    %271 = vmatpush.msra.mxu0 %v160
    %272 = vmatpush.msra.mxu0 %v159
    %273 = vmatpush.msra.mxu0 %v158
    %274 = vmatpush.msra.mxu0 %v157
    %275 = vmatpush.msra.mxu0 %v156
    %276 = vmatpush.msra.mxu0 %v155
    %277 = vmatpush.msra.mxu0 %v154
    %278 = vmatpush.msra.mxu0 %v153
    %279 = vmatpush.msra.mxu0 %v152
    %280 = vmatpush.msra.mxu0 %v151
    %281 = vmatpush.msra.mxu0 %v150
    %282 = vmatpush.msra.mxu0 %v149
    %283 = vmatpush.msra.mxu0 %v148
    %284 = vmatpush.msra.mxu0 %v147
    %285 = vmatpush.msra.mxu0 %v146
    %286 = vmatpush.msra.mxu0 %v145
    %287 = vmatmul.f32.gmra.mxu0 %v270
    %v288 = vpop.f32.mrf.mxu0
    %v289 = vadd.f32 0.0, %v288
    %290 = vdwg.mxu0
    %v291 = vadd.f32 %v136, %v289
    %v292 = vtanh.pop %v291
    %293 = vmatpush.msra.mxu0 %v160
    %294 = vmatpush.msra.mxu0 %v159
    %295 = vmatpush.msra.mxu0 %v158
    %296 = vmatpush.msra.mxu0 %v157
    %297 = vmatpush.msra.mxu0 %v156
    %298 = vmatpush.msra.mxu0 %v155
    %299 = vmatpush.msra.mxu0 %v154
    %300 = vmatpush.msra.mxu0 %v153
    %301 = vmatpush.msra.mxu0 %v152
    %302 = vmatpush.msra.mxu0 %v151
    %303 = vmatpush.msra.mxu0 %v150
    %304 = vmatpush.msra.mxu0 %v149
    %305 = vmatpush.msra.mxu0 %v148
    %306 = vmatpush.msra.mxu0 %v147
    %307 = vmatpush.msra.mxu0 %v146
    %308 = vmatpush.msra.mxu0 %v145
    %309 = vmatmul.f32.gmra.mxu0 %v292
    %v310 = vpop.f32.mrf.mxu0
    %v311 = vadd.f32 0.0, %v310
    %312 = vdwg.mxu0
    %v313 = vadd.f32 %v139, %v311
    %v314 = vtanh.pop %v313
    %315 = vmatpush.msra.mxu0 %v160
    %316 = vmatpush.msra.mxu0 %v159
    %317 = vmatpush.msra.mxu0 %v158
    %318 = vmatpush.msra.mxu0 %v157
    %319 = vmatpush.msra.mxu0 %v156
    %320 = vmatpush.msra.mxu0 %v155
    %321 = vmatpush.msra.mxu0 %v154
    %322 = vmatpush.msra.mxu0 %v153
    %323 = vmatpush.msra.mxu0 %v152
    %324 = vmatpush.msra.mxu0 %v151
    %325 = vmatpush.msra.mxu0 %v150
    %326 = vmatpush.msra.mxu0 %v149
    %327 = vmatpush.msra.mxu0 %v148
    %328 = vmatpush.msra.mxu0 %v147
    %329 = vmatpush.msra.mxu0 %v146
    %330 = vmatpush.msra.mxu0 %v145
    %331 = vmatmul.f32.gmra.mxu0 %v314
    %v332 = vpop.f32.mrf.mxu0
    %v333 = vadd.f32 0.0, %v332
    %334 = vdwg.mxu0
    %v335 = vadd.f32 %v142, %v333
    %v336 = vtanh.pop %v335
    %337 = vst [vmem:[#allocation2] sm:$0xff] %v336
    // Predicated region
    $region38: #{tpu_custom_call.1} parent=1 // pred_check
      %p338 = pneg %p56
    $region39: #{tpu_custom_call.1} parent=1 // pred_check_branch
      %340 = sbr.rel (%p338) target = $region41
    $region40: #{tpu_custom_call.1} parent=1 // pred_region
      %v341 = vld [vmem:[#allocation6] sm:$0xff]
      %v342 = vld [vmem:[#allocation6 + $0x8] sm:$0xff]
      %v343 = vld [vmem:[#allocation6 + $0x10] sm:$0xff]
      %v344 = vld [vmem:[#allocation6 + $0x18] sm:$0xff]
      %v345 = vld [vmem:[#allocation6 + $0x20] sm:$0xff]
      %v346 = vld [vmem:[#allocation6 + $0x28] sm:$0xff]
      %v347 = vld [vmem:[#allocation6 + $0x30] sm:$0xff]
      %v348 = vld [vmem:[#allocation6 + $0x38] sm:$0xff]
      %v349 = vld [vmem:[#allocation6 + $0x40] sm:$0xff]
      %v350 = vld [vmem:[#allocation6 + $0x48] sm:$0xff]
      %v351 = vld [vmem:[#allocation6 + $0x50] sm:$0xff]
      %v352 = vld [vmem:[#allocation6 + $0x58] sm:$0xff]
      %v353 = vld [vmem:[#allocation6 + $0x60] sm:$0xff]
      %v354 = vld [vmem:[#allocation6 + $0x68] sm:$0xff]
      %v355 = vld [vmem:[#allocation6 + $0x70] sm:$0xff]
      %v356 = vld [vmem:[#allocation6 + $0x78] sm:$0xff]
      %v357 = vld [vmem:[%s5] sm:$0x1]
      %v359 = vperm.slane %v357, 0
      %361 = vmatpush.msra.mxu0 %v356
      %362 = vmatpush.msra.mxu0 %v355
      %363 = vmatpush.msra.mxu0 %v354
      %364 = vmatpush.msra.mxu0 %v353
      %365 = vmatpush.msra.mxu0 %v352
      %366 = vmatpush.msra.mxu0 %v351
      %367 = vmatpush.msra.mxu0 %v350
      %368 = vmatpush.msra.mxu0 %v349
      %369 = vmatpush.msra.mxu0 %v348
      %370 = vmatpush.msra.mxu0 %v347
      %371 = vmatpush.msra.mxu0 %v346
      %372 = vmatpush.msra.mxu0 %v345
      %373 = vmatpush.msra.mxu0 %v344
      %374 = vmatpush.msra.mxu0 %v343
      %375 = vmatpush.msra.mxu0 %v342
      %376 = vmatpush.msra.mxu0 %v341
      %377 = vmatmul.f32.gmra.mxu0 %v336
      %v378 = vpop.f32.mrf.mxu0
      %v379 = vadd.f32 %v359, %v378
      %380 = vdwg.mxu0
      %381 = vst [vmem:[#allocation8] sm:$0xff] %v379
    $region41: #{tpu_custom_call.1} parent=1 // pred_fallthru
      _
    // Predicated region
    $region42: #{tpu_custom_call.1} parent=1 // pred_check
      _
    $region43: #{tpu_custom_call.1} parent=1 // pred_check_branch
      %383 = sbr.rel (0) target = $region45
    $region44: #{tpu_custom_call.1} parent=1 // pred_region
      %385 = vsyncadd [#allocation5], 0
      %s387 = sshll.u32 [#allocation8], 4
      %s388 = int_to_ptr.vmem [resolvable:$true] %s387
      %s389 = sshll.u32 %s6, 4
      %s390 = int_to_ptr.hbm [resolvable:$true] %s389
      %392 = dma.vmem_to_hbm [thread:$0]  %s388, 128, %s390, [#allocation5]
    $region45: #{tpu_custom_call.1} parent=1 // pred_fallthru
      _
    // Predicated region
    $region46: #{tpu_custom_call.1} parent=1 // pred_check
      _
    $region47: #{tpu_custom_call.1} parent=1 // pred_check_branch
      %394 = sbr.rel (0) target = $region49
    $region48: #{tpu_custom_call.1} parent=1 // pred_region
      %396 = dma.done [#allocation5], 128
    $region49: #{tpu_custom_call.1} parent=1 // pred_fallthru
      _
    %397 = vsyncpa [#allocation4], 1
    %398 = vsyncpa [#allocation7], 1
    %399 = vsyncpa [#allocation5], 1

</llo_original>
